<compile_context>
chip_gen: v7x
topology: tpu7x:2x2x1
jax: 0.10.0
libtpu: 0.0.40
codegen_flags: <defaults>
</compile_context>

<pallas_src>
import functools
import math

import jax
import jax.numpy as jnp
from jax import lax
from jax.experimental import pallas as pl
from jax.experimental.pallas import tpu as pltpu

_PI_APPROX = 3.1415926   # constant used verbatim in the PyTorch module
_M = 4                   # SphereFace margin (module default m=4)
_NEG_BIG = -1e30         # "minus infinity" for the online LSE (avoids inf arith)


def _round_up(v, m):
    return ((v + m - 1) // m) * m


def _sphereface_kernel(label_ref, scale_ref, x_ref, w_ref,       # inputs
                       out_ref, nll_ref,                          # outputs
                       xn_ref, xnorm_ref, lab_ref,                # scratch
                       m_ref, l_ref, tgt_ref,
                       *, n_tile, c_tile, n_classes):
    n_idx = pl.program_id(0)
    c_idx = pl.program_id(1)
    last_c = pl.num_programs(1) - 1
    eps = 1e-12  # F.normalize eps

    # ---- once per batch tile: normalize x, cache label column, reset stats ----
    @pl.when(c_idx == 0)
    def _init():
        x = x_ref[...].astype(jnp.float32)
        x_norm = jnp.sqrt(jnp.sum(x * x, axis=1, keepdims=True))       # (Nt,1)
        inv_x = pl.reciprocal(jnp.maximum(x_norm, eps), approx=True)   # EUP
        xn_ref[...] = (x * inv_x).astype(jnp.bfloat16)                  # bf16 MXU feed
        xnorm_ref[...] = x_norm
        # Build the (Nt,1) label column from SMEM scalars (one-time, unrolled).
        row = lax.broadcasted_iota(jnp.int32, (n_tile, 1), 0)
        lab = jnp.zeros((n_tile, 1), jnp.int32)
        base = n_idx * n_tile
        for r in range(n_tile):                       # n_tile <= 128, once per tile
            lab = jnp.where(row == r, label_ref[base + r], lab)
        lab_ref[...] = lab
        m_ref[...] = jnp.full((n_tile, 1), _NEG_BIG, jnp.float32)
        l_ref[...] = jnp.zeros((n_tile, 1), jnp.float32)
        tgt_ref[...] = jnp.zeros((n_tile, 1), jnp.float32)

    # ---- per class tile: column-normalize weight, bf16 MXU matmul ----
    w = w_ref[...].astype(jnp.float32)
    w_norm = jnp.sqrt(jnp.sum(w * w, axis=0, keepdims=True))            # (1,Ct)
    inv_w = pl.reciprocal(jnp.maximum(w_norm, eps), approx=True)        # EUP
    w_n = (w * inv_w).astype(jnp.bfloat16)

    cos_theta = jnp.dot(xn_ref[...], w_n, preferred_element_type=jnp.float32)
    cos_theta = jnp.clip(cos_theta, -1.0, 1.0)

    # mlambda[4](c) = 8c^4 - 8c^2 + 1  (Chebyshev: cos(4*theta))
    c2 = cos_theta * cos_theta
    cos_m_theta = 8.0 * c2 * c2 - 8.0 * c2 + 1.0

    # k = floor(m*acos(c)/pi') without acos (acos monotone decreasing):
    #   floor >= i  <=>  c <= cos(i*pi'/m).  Parity of k via XOR chain (no fmod).
    b = [cos_theta <= math.cos(i * _PI_APPROX / _M) for i in range(1, _M + 1)]
    k = (b[0].astype(jnp.float32) + b[1].astype(jnp.float32)
         + b[2].astype(jnp.float32) + b[3].astype(jnp.float32))
    parity = jnp.logical_xor(jnp.logical_xor(b[0], b[1]),
                             jnp.logical_xor(b[2], b[3]))
    sign = 1.0 - 2.0 * parity.astype(jnp.float32)        # (-1) ** k
    phi_theta = sign * cos_m_theta - 2.0 * k

    x_norm = xnorm_ref[...]
    x_cos = cos_theta * x_norm
    x_phi = phi_theta * x_norm

    col = lax.broadcasted_iota(jnp.int32, (n_tile, c_tile), 1) + c_idx * c_tile
    onehot = (col == lab_ref[...]).astype(jnp.float32)
    s = scale_ref[0]                                     # 1/(1+lambda), SMEM scalar
    output = x_cos + onehot * (s * (x_phi - x_cos))
    out_ref[...] = output.astype(out_ref.dtype)

    # ---- online log-softmax stats (mask out padded class columns) ----
    z = jnp.where(col < n_classes, output, _NEG_BIG)
    m_prev = m_ref[...]
    m_new = jnp.maximum(m_prev, jnp.max(z, axis=1, keepdims=True))
    alpha = jnp.exp(m_prev - m_new)
    p_sum = jnp.sum(jnp.exp(z - m_new), axis=1, keepdims=True)
    l_ref[...] = alpha * l_ref[...] + p_sum
    m_ref[...] = m_new
    tgt_ref[...] = tgt_ref[...] + jnp.sum(output * onehot, axis=1, keepdims=True)

    # ---- finalize: per-row NLL (gamma=0), lane-dense store ----
    @pl.when(c_idx == last_c)
    def _finalize():
        lse = m_ref[...] + jnp.log(l_ref[...])
        nll = lse - tgt_ref[...]                          # -log_softmax at target
        nll_ref[...] = jnp.broadcast_to(nll, nll_ref.shape)


def sphereface_forward(x, weight, label, it, lambda_min=3.0, lambda_max=30000.0):
    """Replicates SphereFace.forward for m=4; `it` is the (already incremented)
    iteration counter kept as host-side module state."""
    n, f = x.shape
    f2, c = weight.shape
    assert f == f2

    lamb = max(lambda_min, lambda_max / (1.0 + 0.2 * it))
    scale = jnp.full((1,), 1.0 / (1.0 + lamb), dtype=jnp.float32)

    # Tile / padding choices: lane-dense class tiles (multiple of 128),
    # batch tiles a multiple of 8 sublanes.
    c_tile = min(512, _round_up(c, 128))
    c_pad = _round_up(c, c_tile)
    n_tile = min(128, _round_up(n, 8))
    n_pad = _round_up(n, n_tile)

    x_p = jnp.zeros((n_pad, f), jnp.float32).at[:n, :].set(x.astype(jnp.float32))
    w_p = jnp.zeros((f, c_pad), jnp.float32).at[:, :c].set(weight.astype(jnp.float32))
    lab_p = jnp.zeros((n_pad,), jnp.int32).at[:n].set(label.astype(jnp.int32))

    grid = (n_pad // n_tile, c_pad // c_tile)

    kernel = functools.partial(_sphereface_kernel,
                               n_tile=n_tile, c_tile=c_tile, n_classes=c)

    # Explicit scoped-VMEM budget with double-buffering headroom; stays well
    # under v7x's 64 MiB physical VMEM.
    block_bytes = 4 * (n_tile * f + f * c_tile + n_tile * c_tile + n_tile * 128)
    vmem_limit = int(min(48 * 1024 * 1024,
                         max(16 * 1024 * 1024, 4 * block_bytes + (2 << 20))))

    out_p, nll_p = pl.pallas_call(
        kernel,
        out_shape=(
            jax.ShapeDtypeStruct((n_pad, c_pad), jnp.float32),   # margin logits
            jax.ShapeDtypeStruct((n_pad, 128), jnp.float32),     # per-row NLL (lane-dense)
        ),
        grid_spec=pltpu.PrefetchScalarGridSpec(
            num_scalar_prefetch=1,                               # label -> SMEM
            grid=grid,
            in_specs=[
                pl.BlockSpec(memory_space=pltpu.MemorySpace.SMEM),        # scale (1,)
                pl.BlockSpec((n_tile, f), lambda i, j, lab: (i, 0)),      # x
                pl.BlockSpec((f, c_tile), lambda i, j, lab: (0, j)),      # weight
            ],
            out_specs=(
                pl.BlockSpec((n_tile, c_tile), lambda i, j, lab: (i, j)),  # output
                pl.BlockSpec((n_tile, 128), lambda i, j, lab: (i, 0)),     # nll
            ),
            scratch_shapes=[
                pltpu.VMEM((n_tile, f), jnp.bfloat16),   # normalized x (resident)
                pltpu.VMEM((n_tile, 1), jnp.float32),    # ||x||
                pltpu.VMEM((n_tile, 1), jnp.int32),      # label column
                pltpu.VMEM((n_tile, 1), jnp.float32),    # running max
                pltpu.VMEM((n_tile, 1), jnp.float32),    # running sum-exp
                pltpu.VMEM((n_tile, 1), jnp.float32),    # target logit
            ],
        ),
        compiler_params=pltpu.CompilerParams(
            dimension_semantics=("parallel", "arbitrary"),
            vmem_limit_bytes=vmem_limit,
        ),
        cost_estimate=pl.CostEstimate(
            flops=int(2 * n_pad * f * c_pad),
            transcendentals=int(n_pad * c_pad + 4 * n_pad),
            bytes_accessed=int(4 * (n_pad * f + f * c_pad + n_pad * c_pad
                                    + n_pad * 128) + 4 * n_pad),
        ),
    )(lab_p, scale, x_p, w_p)

    output = out_p[:n, :c]
    loss = jnp.mean(nll_p[:n, 0])        # gamma = 0 -> plain NLL mean (real rows only)
    return output, loss


def _reference(x, weight, label, it, lambda_min=3.0, lambda_max=30000.0, m=4):
    """Pure-JAX f32 reference mirroring the PyTorch code (validation only)."""
    eps = 1e-12
    x_norm = jnp.sqrt(jnp.sum(x * x, axis=1, keepdims=True))
    cos_theta = (x / jnp.maximum(x_norm, eps)) @ (
        weight / jnp.maximum(jnp.sqrt(jnp.sum(weight**2, axis=0, keepdims=True)), eps))
    cos_theta = jnp.clip(cos_theta, -1.0, 1.0)
    cos_m_theta = 8 * cos_theta**4 - 8 * cos_theta**2 + 1
    theta = jnp.arccos(cos_theta)
    k = jnp.floor(m * theta / _PI_APPROX)
    sign = jnp.where(jnp.mod(k, 2.0) == 0, 1.0, -1.0)     # (-1) ** k
    phi_theta = sign * cos_m_theta - 2 * k
    x_cos = cos_theta * x_norm
    x_phi = phi_theta * x_norm
    onehot = jax.nn.one_hot(label, cos_theta.shape[1], dtype=jnp.float32)
    lamb = max(lambda_min, lambda_max / (1.0 + 0.2 * it))
    output = x_cos + onehot * ((x_phi - x_cos) / (1.0 + lamb))
    logp = jax.nn.log_softmax(output, axis=1)
    log_t = jnp.sum(logp * onehot, axis=1)
    loss = -jnp.mean(log_t)   # gamma = 0
    return output, loss


if __name__ == "__main__":
    key = jax.random.PRNGKey(0)
    kx, kw, kl = jax.random.split(key, 3)
    N, F_DIM, C = 8, 32, 16          # batch, n_output (features), n_classes

    x = jax.random.normal(kx, (N, F_DIM), dtype=jnp.float32)

    # Deterministic parameter init: xavier_uniform_ then renorm_(2,1,1e-5).mul_(1e5)
    bound = math.sqrt(6.0 / (F_DIM + C))
    w = jax.random.uniform(kw, (F_DIM, C), minval=-bound, maxval=bound,
                           dtype=jnp.float32)
    col_norm = jnp.sqrt(jnp.sum(w * w, axis=0, keepdims=True))
    w = w * (jnp.minimum(1.0, 1e-5 / (col_norm + 1e-7)) * 1e5)

    label = jax.random.randint(kl, (N,), 0, C, dtype=jnp.int32)

    it = 1  # the module does self.it += 1 before using it; first call -> it == 1
    out, loss = sphereface_forward(x, w, label, it)
    jax.block_until_ready((out, loss))

    ref_out, ref_loss = _reference(x, w, label, it)
    # Tolerances account for bf16 MXU operands + approx-reciprocal normalization
    # in the kernel vs. the pure-f32 reference (values range up to ~||x|| ~ 5.7).
    assert jnp.allclose(out, ref_out, atol=5e-2, rtol=5e-3), "output mismatch"
    assert jnp.allclose(loss, ref_loss, atol=5e-2, rtol=2e-2), "loss mismatch"

    print("KERNEL_OK")
</pallas_src>

<mosaic_0001>
module attributes {stable_mosaic.version = 11 : i64} {
  func.func @_sphereface_kernel(%arg0: i32, %arg1: i32, %arg2: memref<8xi32, #tpu.memory_space<smem>>, %arg3: memref<1xf32, #tpu.memory_space<smem>>, %arg4: memref<8x32xf32, #tpu.memory_space<vmem>>, %arg5: memref<32x128xf32, #tpu.memory_space<vmem>>, %arg6: memref<8x128xf32, #tpu.memory_space<vmem>>, %arg7: memref<8x128xf32, #tpu.memory_space<vmem>>, %arg8: memref<8x32xbf16, #tpu.memory_space<vmem>>, %arg9: memref<8x1xf32, #tpu.memory_space<vmem>>, %arg10: memref<8x1xi32, #tpu.memory_space<vmem>>, %arg11: memref<8x1xf32, #tpu.memory_space<vmem>>, %arg12: memref<8x1xf32, #tpu.memory_space<vmem>>, %arg13: memref<8x1xf32, #tpu.memory_space<vmem>>) attributes {dimension_semantics = [#tpu.dimension_semantics<parallel>, #tpu.dimension_semantics<arbitrary>], iteration_bounds = array<i64: 1, 1>, scalar_prefetch = 1 : i64, scratch_operands = 6 : i64, tpu.core_type = #tpu.core_type<tc>, window_params = [{transform_indices = @transform_0, window_bounds = array<i64: 1>}, {transform_indices = @transform_1, window_bounds = array<i64: 8, 32>}, {transform_indices = @transform_2, window_bounds = array<i64: 32, 128>}, {transform_indices = @transform_3, window_bounds = array<i64: 8, 128>}, {transform_indices = @transform_4, window_bounds = array<i64: 8, 128>}]} {
    %c0_i32 = arith.constant 0 : i32
    %0 = arith.cmpi eq, %arg1, %c0_i32 : i32
    %1 = arith.extui %0 : i1 to i32
    %c0_i32_0 = arith.constant 0 : i32
    %2 = arith.cmpi ne, %1, %c0_i32_0 : i32
    scf.if %2 {
      %c0_43 = arith.constant 0 : index
      %c0_44 = arith.constant 0 : index
      %111 = vector.load %arg4[%c0_43, %c0_44] : memref<8x32xf32, #tpu.memory_space<vmem>>, vector<8x32xf32>
      %112 = arith.mulf %111, %111 : vector<8x32xf32>
      %cst_45 = arith.constant dense<0.000000e+00> : vector<8xf32>
      %113 = vector.multi_reduction <add>, %112, %cst_45 [1] : vector<8x32xf32> to vector<8xf32>
      %114 = vector.shape_cast %113 : vector<8xf32> to vector<8x1xf32>
      %115 = math.sqrt %114 : vector<8x1xf32>
      %cst_46 = arith.constant 9.99999996E-13 : f32
      %116 = vector.broadcast %cst_46 : f32 to vector<8x1xf32>
      %117 = arith.maximumf %115, %116 : vector<8x1xf32>
      %118 = tpu.reciprocal %117 {approx = true} : vector<8x1xf32> -> vector<8x1xf32>
      %119 = vector.broadcast %118 : vector<8x1xf32> to vector<8x32xf32>
      %120 = arith.mulf %111, %119 : vector<8x32xf32>
      %121 = arith.truncf %120 : vector<8x32xf32> to vector<8x32xbf16>
      %c0_47 = arith.constant 0 : index
      %c0_48 = arith.constant 0 : index
      %122 = vector.load %arg8[%c0_47, %c0_48] : memref<8x32xbf16, #tpu.memory_space<vmem>>, vector<8x32xbf16>
      tpu.vector_store %arg8[%c0_47, %c0_48], %121 {strides = array<i32>} : memref<8x32xbf16, #tpu.memory_space<vmem>>, vector<8x32xbf16>,
      %c0_49 = arith.constant 0 : index
      %c0_50 = arith.constant 0 : index
      %123 = vector.load %arg9[%c0_49, %c0_50] : memref<8x1xf32, #tpu.memory_space<vmem>>, vector<8x1xf32>
      tpu.vector_store %arg9[%c0_49, %c0_50], %115 {strides = array<i32>} : memref<8x1xf32, #tpu.memory_space<vmem>>, vector<8x1xf32>,
      %124 = tpu.iota {dimensions = array<i32: 0>} : vector<8x1xi32>
      %c0_i32_51 = arith.constant 0 : i32
      %125 = vector.broadcast %c0_i32_51 : i32 to vector<8x1xi32>
      %c8_i32 = arith.constant 8 : i32
      %126 = arith.muli %arg0, %c8_i32 : i32
      %c0_i32_52 = arith.constant 0 : i32
      %127 = vector.broadcast %c0_i32_52 : i32 to vector<8x1xi32>
      %128 = arith.cmpi eq, %124, %127 : vector<8x1xi32>
      %c0_i32_53 = arith.constant 0 : i32
      %129 = arith.addi %126, %c0_i32_53 : i32
      %130 = arith.index_cast %129 : i32 to index
      %131 = memref.load %arg2[%130] : memref<8xi32, #tpu.memory_space<smem>>
      %132 = vector.broadcast %131 : i32 to vector<8x1xi32>
      %133 = arith.select %128, %132, %125 : vector<8x1xi1>, vector<8x1xi32>
      %c1_i32 = arith.constant 1 : i32
      %134 = vector.broadcast %c1_i32 : i32 to vector<8x1xi32>
      %135 = arith.cmpi eq, %124, %134 : vector<8x1xi32>
      %c1_i32_54 = arith.constant 1 : i32
      %136 = arith.addi %126, %c1_i32_54 : i32
      %137 = arith.index_cast %136 : i32 to index
      %138 = memref.load %arg2[%137] : memref<8xi32, #tpu.memory_space<smem>>
      %139 = vector.broadcast %138 : i32 to vector<8x1xi32>
      %140 = arith.select %135, %139, %133 : vector<8x1xi1>, vector<8x1xi32>
      %c2_i32 = arith.constant 2 : i32
      %141 = vector.broadcast %c2_i32 : i32 to vector<8x1xi32>
      %142 = arith.cmpi eq, %124, %141 : vector<8x1xi32>
      %c2_i32_55 = arith.constant 2 : i32
      %143 = arith.addi %126, %c2_i32_55 : i32
      %144 = arith.index_cast %143 : i32 to index
      %145 = memref.load %arg2[%144] : memref<8xi32, #tpu.memory_space<smem>>
      %146 = vector.broadcast %145 : i32 to vector<8x1xi32>
      %147 = arith.select %142, %146, %140 : vector<8x1xi1>, vector<8x1xi32>
      %c3_i32 = arith.constant 3 : i32
      %148 = vector.broadcast %c3_i32 : i32 to vector<8x1xi32>
      %149 = arith.cmpi eq, %124, %148 : vector<8x1xi32>
      %c3_i32_56 = arith.constant 3 : i32
      %150 = arith.addi %126, %c3_i32_56 : i32
      %151 = arith.index_cast %150 : i32 to index
      %152 = memref.load %arg2[%151] : memref<8xi32, #tpu.memory_space<smem>>
      %153 = vector.broadcast %152 : i32 to vector<8x1xi32>
      %154 = arith.select %149, %153, %147 : vector<8x1xi1>, vector<8x1xi32>
      %c4_i32 = arith.constant 4 : i32
      %155 = vector.broadcast %c4_i32 : i32 to vector<8x1xi32>
      %156 = arith.cmpi eq, %124, %155 : vector<8x1xi32>
      %c4_i32_57 = arith.constant 4 : i32
      %157 = arith.addi %126, %c4_i32_57 : i32
      %158 = arith.index_cast %157 : i32 to index
      %159 = memref.load %arg2[%158] : memref<8xi32, #tpu.memory_space<smem>>
      %160 = vector.broadcast %159 : i32 to vector<8x1xi32>
      %161 = arith.select %156, %160, %154 : vector<8x1xi1>, vector<8x1xi32>
      %c5_i32 = arith.constant 5 : i32
      %162 = vector.broadcast %c5_i32 : i32 to vector<8x1xi32>
      %163 = arith.cmpi eq, %124, %162 : vector<8x1xi32>
      %c5_i32_58 = arith.constant 5 : i32
      %164 = arith.addi %126, %c5_i32_58 : i32
      %165 = arith.index_cast %164 : i32 to index
      %166 = memref.load %arg2[%165] : memref<8xi32, #tpu.memory_space<smem>>
      %167 = vector.broadcast %166 : i32 to vector<8x1xi32>
      %168 = arith.select %163, %167, %161 : vector<8x1xi1>, vector<8x1xi32>
      %c6_i32 = arith.constant 6 : i32
      %169 = vector.broadcast %c6_i32 : i32 to vector<8x1xi32>
      %170 = arith.cmpi eq, %124, %169 : vector<8x1xi32>
      %c6_i32_59 = arith.constant 6 : i32
      %171 = arith.addi %126, %c6_i32_59 : i32
      %172 = arith.index_cast %171 : i32 to index
      %173 = memref.load %arg2[%172] : memref<8xi32, #tpu.memory_space<smem>>
      %174 = vector.broadcast %173 : i32 to vector<8x1xi32>
      %175 = arith.select %170, %174, %168 : vector<8x1xi1>, vector<8x1xi32>
      %c7_i32 = arith.constant 7 : i32
      %176 = vector.broadcast %c7_i32 : i32 to vector<8x1xi32>
      %177 = arith.cmpi eq, %124, %176 : vector<8x1xi32>
      %c7_i32_60 = arith.constant 7 : i32
      %178 = arith.addi %126, %c7_i32_60 : i32
      %179 = arith.index_cast %178 : i32 to index
      %180 = memref.load %arg2[%179] : memref<8xi32, #tpu.memory_space<smem>>
      %181 = vector.broadcast %180 : i32 to vector<8x1xi32>
      %182 = arith.select %177, %181, %175 : vector<8x1xi1>, vector<8x1xi32>
      %c0_61 = arith.constant 0 : index
      %c0_62 = arith.constant 0 : index
      %183 = vector.load %arg10[%c0_61, %c0_62] : memref<8x1xi32, #tpu.memory_space<vmem>>, vector<8x1xi32>
      tpu.vector_store %arg10[%c0_61, %c0_62], %182 {strides = array<i32>} : memref<8x1xi32, #tpu.memory_space<vmem>>, vector<8x1xi32>,
      %cst_63 = arith.constant -1.000000e+30 : f32
      %184 = vector.broadcast %cst_63 : f32 to vector<8x1xf32>
      %c0_64 = arith.constant 0 : index
      %c0_65 = arith.constant 0 : index
      %185 = vector.load %arg11[%c0_64, %c0_65] : memref<8x1xf32, #tpu.memory_space<vmem>>, vector<8x1xf32>
      tpu.vector_store %arg11[%c0_64, %c0_65], %184 {strides = array<i32>} : memref<8x1xf32, #tpu.memory_space<vmem>>, vector<8x1xf32>,
      %cst_66 = arith.constant 0.000000e+00 : f32
      %186 = vector.broadcast %cst_66 : f32 to vector<8x1xf32>
      %c0_67 = arith.constant 0 : index
      %c0_68 = arith.constant 0 : index
      %187 = vector.load %arg12[%c0_67, %c0_68] : memref<8x1xf32, #tpu.memory_space<vmem>>, vector<8x1xf32>
      tpu.vector_store %arg12[%c0_67, %c0_68], %186 {strides = array<i32>} : memref<8x1xf32, #tpu.memory_space<vmem>>, vector<8x1xf32>,
      %cst_69 = arith.constant 0.000000e+00 : f32
      %188 = vector.broadcast %cst_69 : f32 to vector<8x1xf32>
      %c0_70 = arith.constant 0 : index
      %c0_71 = arith.constant 0 : index
      %189 = vector.load %arg13[%c0_70, %c0_71] : memref<8x1xf32, #tpu.memory_space<vmem>>, vector<8x1xf32>
      tpu.vector_store %arg13[%c0_70, %c0_71], %188 {strides = array<i32>} : memref<8x1xf32, #tpu.memory_space<vmem>>, vector<8x1xf32>,
    } else {
    }
    %c0 = arith.constant 0 : index
    %c0_1 = arith.constant 0 : index
    %3 = vector.load %arg5[%c0, %c0_1] : memref<32x128xf32, #tpu.memory_space<vmem>>, vector<32x128xf32>
    %4 = arith.mulf %3, %3 : vector<32x128xf32>
    %cst = arith.constant dense<0.000000e+00> : vector<128xf32>
    %5 = vector.multi_reduction <add>, %4, %cst [0] : vector<32x128xf32> to vector<128xf32>
    %6 = vector.shape_cast %5 : vector<128xf32> to vector<1x128xf32>
    %7 = math.sqrt %6 : vector<1x128xf32>
    %cst_2 = arith.constant 9.99999996E-13 : f32
    %8 = vector.broadcast %cst_2 : f32 to vector<1x128xf32>
    %9 = arith.maximumf %7, %8 : vector<1x128xf32>
    %10 = tpu.reciprocal %9 {approx = true} : vector<1x128xf32> -> vector<1x128xf32>
    %11 = vector.broadcast %10 : vector<1x128xf32> to vector<32x128xf32>
    %12 = arith.mulf %3, %11 : vector<32x128xf32>
    %13 = arith.truncf %12 : vector<32x128xf32> to vector<32x128xbf16>
    %c0_3 = arith.constant 0 : index
    %c0_4 = arith.constant 0 : index
    %14 = vector.load %arg8[%c0_3, %c0_4] : memref<8x32xbf16, #tpu.memory_space<vmem>>, vector<8x32xbf16>
    %cst_5 = arith.constant dense<0.000000e+00> : vector<8x128xf32>
    %15 = tpu.matmul %14, %13, %cst_5 {dimension_numbers = #tpu.dot_dimension_numbers<[1], [0], [0], [1], [0, 0, 1, 1], [], []>} : vector<8x32xbf16>, vector<32x128xbf16>, vector<8x128xf32> -> vector<8x128xf32>
    %cst_6 = arith.constant -1.000000e+00 : f32
    %cst_7 = arith.constant 1.000000e+00 : f32
    %16 = vector.broadcast %cst_6 : f32 to vector<8x128xf32>
    %17 = arith.maximumf %16, %15 : vector<8x128xf32>
    %18 = vector.broadcast %cst_7 : f32 to vector<8x128xf32>
    %19 = arith.minimumf %18, %17 : vector<8x128xf32>
    %20 = arith.mulf %19, %19 : vector<8x128xf32>
    %cst_8 = arith.constant 8.000000e+00 : f32
    %21 = vector.broadcast %cst_8 : f32 to vector<8x128xf32>
    %22 = arith.mulf %21, %20 : vector<8x128xf32>
    %23 = arith.mulf %22, %20 : vector<8x128xf32>
    %cst_9 = arith.constant 8.000000e+00 : f32
    %24 = vector.broadcast %cst_9 : f32 to vector<8x128xf32>
    %25 = arith.mulf %24, %20 : vector<8x128xf32>
    %26 = arith.subf %23, %25 : vector<8x128xf32>
    %cst_10 = arith.constant 1.000000e+00 : f32
    %27 = vector.broadcast %cst_10 : f32 to vector<8x128xf32>
    %28 = arith.addf %26, %27 : vector<8x128xf32>
    %cst_11 = arith.constant 0.707106769 : f32
    %29 = vector.broadcast %cst_11 : f32 to vector<8x128xf32>
    %30 = arith.cmpf ole, %19, %29 : vector<8x128xf32>
    %cst_12 = arith.constant 2.6794897E-8 : f32
    %31 = vector.broadcast %cst_12 : f32 to vector<8x128xf32>
    %32 = arith.cmpf ole, %19, %31 : vector<8x128xf32>
    %cst_13 = arith.constant -0.707106769 : f32
    %33 = vector.broadcast %cst_13 : f32 to vector<8x128xf32>
    %34 = arith.cmpf ole, %19, %33 : vector<8x128xf32>
    %cst_14 = arith.constant -1.000000e+00 : f32
    %35 = vector.broadcast %cst_14 : f32 to vector<8x128xf32>
    %36 = arith.cmpf ole, %19, %35 : vector<8x128xf32>
    %37 = arith.extui %30 : vector<8x128xi1> to vector<8x128xi32>
    %38 = arith.sitofp %37 : vector<8x128xi32> to vector<8x128xf32>
    %39 = arith.extui %32 : vector<8x128xi1> to vector<8x128xi32>
    %40 = arith.sitofp %39 : vector<8x128xi32> to vector<8x128xf32>
    %41 = arith.addf %38, %40 : vector<8x128xf32>
    %42 = arith.extui %34 : vector<8x128xi1> to vector<8x128xi32>
    %43 = arith.sitofp %42 : vector<8x128xi32> to vector<8x128xf32>
    %44 = arith.addf %41, %43 : vector<8x128xf32>
    %45 = arith.extui %36 : vector<8x128xi1> to vector<8x128xi32>
    %46 = arith.sitofp %45 : vector<8x128xi32> to vector<8x128xf32>
    %47 = arith.addf %44, %46 : vector<8x128xf32>
    %48 = arith.xori %30, %32 : vector<8x128xi1>
    %49 = arith.xori %34, %36 : vector<8x128xi1>
    %50 = arith.xori %48, %49 : vector<8x128xi1>
    %51 = arith.extui %50 : vector<8x128xi1> to vector<8x128xi32>
    %52 = arith.sitofp %51 : vector<8x128xi32> to vector<8x128xf32>
    %cst_15 = arith.constant 2.000000e+00 : f32
    %53 = vector.broadcast %cst_15 : f32 to vector<8x128xf32>
    %54 = arith.mulf %53, %52 : vector<8x128xf32>
    %cst_16 = arith.constant 1.000000e+00 : f32
    %55 = vector.broadcast %cst_16 : f32 to vector<8x128xf32>
    %56 = arith.subf %55, %54 : vector<8x128xf32>
    %57 = arith.mulf %56, %28 : vector<8x128xf32>
    %cst_17 = arith.constant 2.000000e+00 : f32
    %58 = vector.broadcast %cst_17 : f32 to vector<8x128xf32>
    %59 = arith.mulf %58, %47 : vector<8x128xf32>
    %60 = arith.subf %57, %59 : vector<8x128xf32>
    %c0_18 = arith.constant 0 : index
    %c0_19 = arith.constant 0 : index
    %61 = vector.load %arg9[%c0_18, %c0_19] : memref<8x1xf32, #tpu.memory_space<vmem>>, vector<8x1xf32>
    %62 = vector.broadcast %61 : vector<8x1xf32> to vector<8x128xf32>
    %63 = arith.mulf %19, %62 : vector<8x128xf32>
    %64 = vector.broadcast %61 : vector<8x1xf32> to vector<8x128xf32>
    %65 = arith.mulf %60, %64 : vector<8x128xf32>
    %66 = tpu.iota {dimensions = array<i32: 1>} : vector<8x128xi32>
    %c128_i32 = arith.constant 128 : i32
    %67 = arith.muli %arg1, %c128_i32 : i32
    %68 = vector.broadcast %67 : i32 to vector<8x128xi32>
    %69 = arith.addi %66, %68 : vector<8x128xi32>
    %c0_20 = arith.constant 0 : index
    %c0_21 = arith.constant 0 : index
    %70 = vector.load %arg10[%c0_20, %c0_21] : memref<8x1xi32, #tpu.memory_space<vmem>>, vector<8x1xi32>
    %71 = vector.broadcast %70 : vector<8x1xi32> to vector<8x128xi32>
    %72 = arith.cmpi eq, %69, %71 : vector<8x128xi32>
    %73 = arith.extui %72 : vector<8x128xi1> to vector<8x128xi32>
    %74 = arith.sitofp %73 : vector<8x128xi32> to vector<8x128xf32>
    %c0_22 = arith.constant 0 : index
    %75 = memref.load %arg3[%c0_22] : memref<1xf32, #tpu.memory_space<smem>>
    %76 = arith.subf %65, %63 : vector<8x128xf32>
    %77 = vector.broadcast %75 : f32 to vector<8x128xf32>
    %78 = arith.mulf %77, %76 : vector<8x128xf32>
    %79 = arith.mulf %74, %78 : vector<8x128xf32>
    %80 = arith.addf %63, %79 : vector<8x128xf32>
    %c0_23 = arith.constant 0 : index
    %c0_24 = arith.constant 0 : index
    %81 = vector.load %arg6[%c0_23, %c0_24] : memref<8x128xf32, #tpu.memory_space<vmem>>, vector<8x128xf32>
    tpu.vector_store %arg6[%c0_23, %c0_24], %80 {strides = array<i32>} : memref<8x128xf32, #tpu.memory_space<vmem>>, vector<8x128xf32>,
    %c16_i32 = arith.constant 16 : i32
    %82 = vector.broadcast %c16_i32 : i32 to vector<8x128xi32>
    %83 = arith.cmpi slt, %69, %82 : vector<8x128xi32>
    %cst_25 = arith.constant -1.000000e+30 : f32
    %84 = vector.broadcast %cst_25 : f32 to vector<8x128xf32>
    %85 = arith.select %83, %80, %84 : vector<8x128xi1>, vector<8x128xf32>
    %c0_26 = arith.constant 0 : index
    %c0_27 = arith.constant 0 : index
    %86 = vector.load %arg11[%c0_26, %c0_27] : memref<8x1xf32, #tpu.memory_space<vmem>>, vector<8x1xf32>
    %cst_28 = arith.constant dense<0xFF800000> : vector<8xf32>
    %87 = vector.multi_reduction <maximumf>, %85, %cst_28 [1] : vector<8x128xf32> to vector<8xf32>
    %88 = vector.shape_cast %87 : vector<8xf32> to vector<8x1xf32>
    %89 = arith.maximumf %86, %88 : vector<8x1xf32>
    %90 = arith.subf %86, %89 : vector<8x1xf32>
    %91 = math.exp %90 : vector<8x1xf32>
    %92 = vector.broadcast %89 : vector<8x1xf32> to vector<8x128xf32>
    %93 = arith.subf %85, %92 : vector<8x128xf32>
    %94 = math.exp %93 : vector<8x128xf32>
    %cst_29 = arith.constant dense<0.000000e+00> : vector<8xf32>
    %95 = vector.multi_reduction <add>, %94, %cst_29 [1] : vector<8x128xf32> to vector<8xf32>
    %96 = vector.shape_cast %95 : vector<8xf32> to vector<8x1xf32>
    %c0_30 = arith.constant 0 : index
    %c0_31 = arith.constant 0 : index
    %97 = vector.load %arg12[%c0_30, %c0_31] : memref<8x1xf32, #tpu.memory_space<vmem>>, vector<8x1xf32>
    %98 = arith.mulf %91, %97 : vector<8x1xf32>
    %99 = arith.addf %98, %96 : vector<8x1xf32>
    %c0_32 = arith.constant 0 : index
    %c0_33 = arith.constant 0 : index
    %100 = vector.load %arg12[%c0_32, %c0_33] : memref<8x1xf32, #tpu.memory_space<vmem>>, vector<8x1xf32>
    tpu.vector_store %arg12[%c0_32, %c0_33], %99 {strides = array<i32>} : memref<8x1xf32, #tpu.memory_space<vmem>>, vector<8x1xf32>,
    %c0_34 = arith.constant 0 : index
    %c0_35 = arith.constant 0 : index
    %101 = vector.load %arg11[%c0_34, %c0_35] : memref<8x1xf32, #tpu.memory_space<vmem>>, vector<8x1xf32>
    tpu.vector_store %arg11[%c0_34, %c0_35], %89 {strides = array<i32>} : memref<8x1xf32, #tpu.memory_space<vmem>>, vector<8x1xf32>,
    %c0_36 = arith.constant 0 : index
    %c0_37 = arith.constant 0 : index
    %102 = vector.load %arg13[%c0_36, %c0_37] : memref<8x1xf32, #tpu.memory_space<vmem>>, vector<8x1xf32>
    %103 = arith.mulf %80, %74 : vector<8x128xf32>
    %cst_38 = arith.constant dense<0.000000e+00> : vector<8xf32>
    %104 = vector.multi_reduction <add>, %103, %cst_38 [1] : vector<8x128xf32> to vector<8xf32>
    %105 = vector.shape_cast %104 : vector<8xf32> to vector<8x1xf32>
    %106 = arith.addf %102, %105 : vector<8x1xf32>
    %c0_39 = arith.constant 0 : index
    %c0_40 = arith.constant 0 : index
    %107 = vector.load %arg13[%c0_39, %c0_40] : memref<8x1xf32, #tpu.memory_space<vmem>>, vector<8x1xf32>
    tpu.vector_store %arg13[%c0_39, %c0_40], %106 {strides = array<i32>} : memref<8x1xf32, #tpu.memory_space<vmem>>, vector<8x1xf32>,
    %c0_i32_41 = arith.constant 0 : i32
    %108 = arith.cmpi eq, %arg1, %c0_i32_41 : i32
    %109 = arith.extui %108 : i1 to i32
    %c0_i32_42 = arith.constant 0 : i32
    %110 = arith.cmpi ne, %109, %c0_i32_42 : i32
    scf.if %110 {
      %c0_43 = arith.constant 0 : index
      %c0_44 = arith.constant 0 : index
      %111 = vector.load %arg11[%c0_43, %c0_44] : memref<8x1xf32, #tpu.memory_space<vmem>>, vector<8x1xf32>
      %c0_45 = arith.constant 0 : index
      %c0_46 = arith.constant 0 : index
      %112 = vector.load %arg12[%c0_45, %c0_46] : memref<8x1xf32, #tpu.memory_space<vmem>>, vector<8x1xf32>
      %113 = math.log %112 : vector<8x1xf32>
      %114 = arith.addf %111, %113 : vector<8x1xf32>
      %c0_47 = arith.constant 0 : index
      %c0_48 = arith.constant 0 : index
      %115 = vector.load %arg13[%c0_47, %c0_48] : memref<8x1xf32, #tpu.memory_space<vmem>>, vector<8x1xf32>
      %116 = arith.subf %114, %115 : vector<8x1xf32>
      %117 = vector.shape_cast %116 : vector<8x1xf32> to vector<8x1xf32>
      %118 = vector.broadcast %117 : vector<8x1xf32> to vector<8x128xf32>
      %c0_49 = arith.constant 0 : index
      %c0_50 = arith.constant 0 : index
      %119 = vector.load %arg7[%c0_49, %c0_50] : memref<8x128xf32, #tpu.memory_space<vmem>>, vector<8x128xf32>
      tpu.vector_store %arg7[%c0_49, %c0_50], %118 {strides = array<i32>} : memref<8x128xf32, #tpu.memory_space<vmem>>, vector<8x128xf32>,
    } else {
    }
    return
  }
  func.func @transform_0(%arg0: i32, %arg1: i32, %arg2: memref<8xi32, #tpu.memory_space<smem>>) -> i32 {
    %c0_i32 = arith.constant 0 : i32
    %c0_i32_0 = arith.constant 0 : i32
    return %c0_i32 : i32
  }
  func.func @transform_1(%arg0: i32, %arg1: i32, %arg2: memref<8xi32, #tpu.memory_space<smem>>) -> (i32, i32) {
    %c0_i32 = arith.constant 0 : i32
    %c0_i32_0 = arith.constant 0 : i32
    return %arg0, %c0_i32 : i32, i32
  }
  func.func @transform_2(%arg0: i32, %arg1: i32, %arg2: memref<8xi32, #tpu.memory_space<smem>>) -> (i32, i32) {
    %c0_i32 = arith.constant 0 : i32
    %c0_i32_0 = arith.constant 0 : i32
    return %c0_i32, %arg1 : i32, i32
  }
  func.func @transform_3(%arg0: i32, %arg1: i32, %arg2: memref<8xi32, #tpu.memory_space<smem>>) -> (i32, i32) {
    %c0_i32 = arith.constant 0 : i32
    return %arg0, %arg1 : i32, i32
  }
  func.func @transform_4(%arg0: i32, %arg1: i32, %arg2: memref<8xi32, #tpu.memory_space<smem>>) -> (i32, i32) {
    %c0_i32 = arith.constant 0 : i32
    %c0_i32_0 = arith.constant 0 : i32
    return %arg0, %c0_i32 : i32, i32
  }
}

</mosaic_0001>

<llo_original>
// kernel: tpu_custom_call.1
$region0: #{tpu_custom_call.1}
  #allocation0 [shape = 'u32[]', space=smem, size = 0x4, offset = 0x4, fixed_abs, tag = 'smem constant byte address 0x4 - core index']
  #allocation1 [shape = 'u32[144,128]{1,0:T(1,128)}', space=vmem, size = 0x12000, scoped, tag = 'internal scratch']
  #allocation2 [shape = 'bf16[8,32]{1,0:T(8,128)(2,1)}', space=vmem, size = 0x800, scoped, tag = 'scratch operand']
  #allocation3 [shape = 'f32[8,1]{1,0:T(8,128)}', space=vmem, size = 0x1000, scoped, tag = 'scratch operand']
  #allocation4 [shape = 's32[8,1]{1,0:T(8,128)}', space=vmem, size = 0x1000, scoped, tag = 'scratch operand']
  #allocation5 [shape = 'f32[8,1]{1,0:T(8,128)}', space=vmem, size = 0x1000, scoped, tag = 'scratch operand']
  #allocation6 [shape = 'f32[8,1]{1,0:T(8,128)}', space=vmem, size = 0x1000, scoped, tag = 'scratch operand']
  #allocation7 [shape = 'f32[8,1]{1,0:T(8,128)}', space=vmem, size = 0x1000, scoped, tag = 'scratch operand']
  #allocation8 [shape = 's32[1]{0}', space=sflag, size = 0x4, scoped, tag = 'scoped memory for tpu_custom_call.1']
  #allocation9 [shape = 'u8[512]{0}', space=smem, size = 0x200, scoped, tag = 'prefetched SMEM operand 0']
  #allocation10 [shape = 'f32[1]{0:T(128)S(6)}', space=smem, size = 0x200, scoped, tag = 'scoped memory for tpu_custom_call.1']
  %s0 = inlined_call_operand.vmem [shape: s32[8], index: 0, kind: input, shape index: {}]
  %s1 = inlined_call_operand.<no memory space> [shape: f32[1], index: 1, kind: input, shape index: {}]
  %s2 = inlined_call_operand.hbm [shape: f32[8,32], index: 2, kind: input, shape index: {}]
  %s3 = inlined_call_operand.hbm [shape: f32[32,128], index: 3, kind: input, shape index: {}]
  %s4 = inlined_call_operand.hbm [shape: f32[8,128], index: 4, kind: output, shape index: {0}]
  %s5 = inlined_call_operand.hbm [shape: f32[8,128], index: 5, kind: output, shape index: {1}]
  %6 = xla_tuple %s4, %s5
  %s7 = sld [smem:[#allocation0]]
  $region46: #{tpu_custom_call.1} parent=0
    _
  %s9 = ssub.s32 1, %s7
  %s10 = scalar_select 0, %s9, %s7
  %s11 = sshll.u32 %s0, 4
  %s12 = int_to_ptr.vmem [resolvable:$true] %s11
  %14 = dma.vmem_to_smem %s12, 16, [#allocation9], [#allocation8]
  %15 = sst [smem:[#allocation10]] %s1
  %16 = dma.done [#allocation8], 16
  %17 = sfence
  $region1: #{tpu_custom_call.1} parent=0
    #allocation11 [shape = 'u8[4096]{0}', space=vmem, size = 0x1000, scoped, tag = 'input window, operand 2, single buffered']
    #allocation12 [shape = 's32[1]{0}', space=sflag, size = 0x4, scoped, tag = 'scoped memory for tpu_custom_call.1']
    #allocation13 [shape = 's32[1]{0}', space=sflag, size = 0x4, scoped, tag = 'scoped memory for tpu_custom_call.1']
    #allocation14 [shape = 'u8[16384]{0}', space=vmem, size = 0x4000, scoped, tag = 'input window, operand 3, single buffered']
    #allocation15 [shape = 's32[1]{0}', space=sflag, size = 0x4, scoped, tag = 'scoped memory for tpu_custom_call.1']
    #allocation16 [shape = 'u8[4096]{0}', space=vmem, size = 0x1000, scoped, tag = 'output window, operand 0, single buffered']
    #allocation17 [shape = 'u8[4096]{0}', space=vmem, size = 0x1000, scoped, tag = 'output window, operand 1, single buffered']
    #allocation18 [shape = 's32[1]{0}', space=sflag, size = 0x4, scoped, tag = 'scoped memory for tpu_custom_call.1']
    %18 = vsyncpa [#allocation12], 0
    %19 = vsyncpa [#allocation15], 0
    %20 = vsyncpa [#allocation13], 0
    %21 = vsyncpa [#allocation18], 0
    // Predicated region
    $region2: #{tpu_custom_call.1} parent=1 // pred_check
      _
    $region3: #{tpu_custom_call.1} parent=1 // pred_check_branch
      %23 = sbr.rel (0) target = $region5
    $region4: #{tpu_custom_call.1} parent=1 // pred_region
      _
    $region5: #{tpu_custom_call.1} parent=1 // pred_fallthru
      _
    // Predicated region
    $region6: #{tpu_custom_call.1} parent=1 // pred_check
      _
    $region7: #{tpu_custom_call.1} parent=1 // pred_check_branch
      %25 = sbr.rel (0) target = $region9
    $region8: #{tpu_custom_call.1} parent=1 // pred_region
      %s27 = ssub.s32 128, 128
      %28 = vsyncadd [#allocation12], %s27
      %s30 = sshll.u32 [#allocation11], 4
      %s31 = int_to_ptr.vmem [resolvable:$true] %s30
      %33 = dma.hbm_to_vmem [thread:$0]  %s2, 128, %s31, [#allocation12]
    $region9: #{tpu_custom_call.1} parent=1 // pred_fallthru
      _
    // Predicated region
    $region10: #{tpu_custom_call.1} parent=1 // pred_check
      _
    $region11: #{tpu_custom_call.1} parent=1 // pred_check_branch
      %35 = sbr.rel (0) target = $region13
    $region12: #{tpu_custom_call.1} parent=1 // pred_region
      %s37 = ssub.s32 512, 512
      %38 = vsyncadd [#allocation15], %s37
      %s39 = sshll.u32 [#allocation14], 4
      %s40 = int_to_ptr.vmem [resolvable:$true] %s39
      %45 = dma.hbm_to_vmem [thread:$0]  %s3, 512, %s40, [#allocation15], 128, 128, 8
    $region13: #{tpu_custom_call.1} parent=1 // pred_fallthru
      _
    // Predicated region
    $region14: #{tpu_custom_call.1} parent=1 // pred_check
      _
    $region15: #{tpu_custom_call.1} parent=1 // pred_check_branch
      %47 = sbr.rel (0) target = $region17
    $region16: #{tpu_custom_call.1} parent=1 // pred_region
      %48 = dma.done [#allocation12], 128
    $region17: #{tpu_custom_call.1} parent=1 // pred_fallthru
      _
    // Predicated region
    $region18: #{tpu_custom_call.1} parent=1 // pred_check
      _
    $region19: #{tpu_custom_call.1} parent=1 // pred_check_branch
      %50 = sbr.rel (0) target = $region21
    $region20: #{tpu_custom_call.1} parent=1 // pred_region
      %51 = dma.done [#allocation15], 512
    $region21: #{tpu_custom_call.1} parent=1 // pred_fallthru
      _
    %p53 = scmp.eq.s32.totalorder 0, 0
    // Predicated region
    $region22: #{tpu_custom_call.1} parent=1 // pred_check
      %p54 = pneg %p53
    $region23: #{tpu_custom_call.1} parent=1 // pred_check_branch
      %56 = sbr.rel (%p54) target = $region25
    $region24: #{tpu_custom_call.1} parent=1 // pred_region
      %v57 = vld [vmem:[#allocation11] sm:$0xff]
      %v58 = vmul.f32 %v57, %v57
      %vm59 = vcmask 261120
      %v60 = vsel %vm59, %v58, 0.0
      %61 = vadd.xlane.f32.xlu0 %v60
      %v62 = vpop.xlane.xlu0 %61
      %v63 = vrsqrt.pop %v62
      %v64 = vmul.f32 %v62, %v63
      %vm65 = vcmp.eq.f32.partialorder %v62, inf
      %v66 = vsel %vm65, %v62, %v64
      %vm67 = vcmp.eq.f32.partialorder %v62, 0.0
      %v68 = vand.u32 %v62, 2147483648
      %v69 = vsel %vm67, %v68, %v66
      %v70 = vmax.f32 %v69, 1e-12
      %v71 = vrcp.pop %v70
      %v72 = vmul.f32 %v57, %v71
      %v73 = vpack.c.bf16 %v72, %v72
      %vm74 = vcmask 257024
      %75 = vst.msk [vmem:[#allocation2] sm:$0xf] %vm74, %v73
      %vm76 = vcmask 7168
      %77 = vst.msk [vmem:[#allocation3] sm:$0xff] %vm76, %v69
      %v78 = vlaneseq
      %v79 = vshrl.u32 %v78, 7
      %s80 = smul.u32 0, 8
      %vm81 = vcmp.eq.s32.totalorder %v79, 0
      %s82 = sld [smem:[#allocation9 + %s80]]
      %v83 = vstv %s82
      %v84 = vsel %vm81, %v83, 0
      %vm85 = vcmp.eq.s32.totalorder %v79, 1
      %s86 = sadd.s32 %s80, 1
      %s87 = sld [smem:[#allocation9 + %s86]]
      %v88 = vstv %s87
      %v89 = vsel %vm85, %v88, %v84
      %vm90 = vcmp.eq.s32.totalorder %v79, 2
      %s91 = sadd.s32 %s80, 2
      %s92 = sld [smem:[#allocation9 + %s91]]
      %v93 = vstv %s92
      %v94 = vsel %vm90, %v93, %v89
      %vm95 = vcmp.eq.s32.totalorder %v79, 3
      %s96 = sadd.s32 %s80, 3
      %s97 = sld [smem:[#allocation9 + %s96]]
      %v98 = vstv %s97
      %v99 = vsel %vm95, %v98, %v94
      %vm100 = vcmp.eq.s32.totalorder %v79, 4
      %s101 = sadd.s32 %s80, 4
      %s102 = sld [smem:[#allocation9 + %s101]]
      %v103 = vstv %s102
      %v104 = vsel %vm100, %v103, %v99
      %vm105 = vcmp.eq.s32.totalorder %v79, 5
      %s106 = sadd.s32 %s80, 5
      %s107 = sld [smem:[#allocation9 + %s106]]
      %v108 = vstv %s107
      %v109 = vsel %vm105, %v108, %v104
      %vm110 = vcmp.eq.s32.totalorder %v79, 6
      %s111 = sadd.s32 %s80, 6
      %s112 = sld [smem:[#allocation9 + %s111]]
      %v113 = vstv %s112
      %v114 = vsel %vm110, %v113, %v109
      %vm115 = vcmp.eq.s32.totalorder %v79, 7
      %s116 = sadd.s32 %s80, 7
      %s117 = sld [smem:[#allocation9 + %s116]]
      %v118 = vstv %s117
      %v119 = vsel %vm115, %v118, %v114
      %120 = vst.msk [vmem:[#allocation4] sm:$0xff] %vm76, %v119
      %121 = vst.msk [vmem:[#allocation5] sm:$0xff] %vm76, -1e+30
      %122 = vst.msk [vmem:[#allocation6] sm:$0xff] %vm76, 0.0
      %123 = vst.msk [vmem:[#allocation7] sm:$0xff] %vm76, 0.0
    $region25: #{tpu_custom_call.1} parent=1 // pred_fallthru
      _
    %v124 = vld [vmem:[#allocation14] sm:$0xff]
    %v125 = vld [vmem:[#allocation14 + $0x8] sm:$0xff]
    %v126 = vld [vmem:[#allocation14 + $0x10] sm:$0xff]
    %v127 = vld [vmem:[#allocation14 + $0x18] sm:$0xff]
    %v128 = vmul.f32 %v124, %v124
    %v129 = vmul.f32 %v125, %v125
    %v130 = vmul.f32 %v126, %v126
    %v131 = vmul.f32 %v127, %v127
    %v132 = vadd.f32 %v128, %v129
    %v133 = vadd.f32 %v132, %v130
    %v134 = vadd.f32 %v133, %v131
    %v135 = vrot.slane %v134, 4
    %v136 = vadd.f32 %v134, %v135
    %v137 = vrot.slane %v136, 2
    %v138 = vadd.f32 %v136, %v137
    %v139 = vrot.slane %v138, 1
    %v140 = vadd.f32 %v138, %v139
    %v141 = vrsqrt.pop %v140
    %v142 = vmul.f32 %v140, %v141
    %vm143 = vcmp.eq.f32.partialorder %v140, inf
    %v144 = vsel %vm143, %v140, %v142
    %vm145 = vcmp.eq.f32.partialorder %v140, 0.0
    %v146 = vand.u32 %v140, 2147483648
    %v147 = vsel %vm145, %v146, %v144
    %v148 = vmax.f32 %v147, 1e-12
    %v149 = vrcp.pop %v148
    %v150 = vmul.f32 %v124, %v149
    %v151 = vmul.f32 %v125, %v149
    %v152 = vmul.f32 %v126, %v149
    %v153 = vmul.f32 %v127, %v149
    %v154 = vpack.c.bf16 %v151, %v150
    %v155 = vpack.c.bf16 %v153, %v152
    %v156 = vld [vmem:[#allocation2] sm:$0xf]
    %vm157 = vcmask 261120
    %v159 = vsel %vm157, %v156, 0
    %161 = vmatprep.subr.bf16.mxu0 0
    %162 = vmatpush1.bf16.msra.mxu0 %v154
    %163 = vmatprep.subr.bf16.mxu0 0
    %164 = vmatpush1.bf16.msra.mxu0 %v155
    %165 = vmatprep.subr.bf16.mxu0 0
    %166 = vmatpush1.bf16.msra.mxu0 0
    %167 = vmatprep.subr.bf16.mxu0 0
    %168 = vmatpush1.bf16.msra.mxu0 0
    %169 = vmatprep.subr.bf16.mxu0 0
    %170 = vmatpush1.bf16.msra.mxu0 0
    %171 = vmatprep.subr.bf16.mxu0 0
    %172 = vmatpush1.bf16.msra.mxu0 0
    %173 = vmatprep.subr.bf16.mxu0 0
    %174 = vmatpush1.bf16.msra.mxu0 0
    %175 = vmatprep.subr.bf16.mxu0 0
    %176 = vmatpush1.bf16.msra.mxu0 0
    %177 = vmatprep.subr.bf16.mxu0 0
    %178 = vmatpush1.bf16.msra.mxu0 0
    %179 = vmatprep.subr.bf16.mxu0 0
    %180 = vmatpush1.bf16.msra.mxu0 0
    %181 = vmatprep.subr.bf16.mxu0 0
    %182 = vmatpush1.bf16.msra.mxu0 0
    %183 = vmatprep.subr.bf16.mxu0 0
    %184 = vmatpush1.bf16.msra.mxu0 0
    %185 = vmatprep.subr.bf16.mxu0 0
    %186 = vmatpush1.bf16.msra.mxu0 0
    %187 = vmatprep.subr.bf16.mxu0 0
    %188 = vmatpush1.bf16.msra.mxu0 0
    %189 = vmatprep.subr.bf16.mxu0 0
    %190 = vmatpush1.bf16.msra.mxu0 0
    %191 = vmatprep.subr.bf16.mxu0 0
    %192 = vmatpush1.bf16.msra.mxu0 0
    %193 = vmatprep.mubr.bf16.mxu0 0
    %194 = vmatmul.mubr.bf16.gmra.mrb[0].mxu0 %v159
    %v195 = vpop.f32.mrb[0].mxu0
    %v196 = vadd.f32 0.0, %v195
    %v197 = vpop.f32.mrb[0].mxu0
    %v198 = vpop.f32.mrb[0].mxu0
    %v199 = vpop.f32.mrb[0].mxu0
    %200 = vdwg.mxu0
    %v201 = vmax.f32 %v196, -1.0
    %v202 = vmin.f32 %v201, 1.0
    %v203 = vmul.f32 %v202, %v202
    %v204 = vmul.f32 %v203, 8.0
    %v205 = vmul.f32 %v204, %v203
    %v206 = vsub.f32 %v205, %v204
    %v207 = vadd.f32 %v206, 1.0
    %vm208 = vcmp.le.f32.partialorder %v202, 0.70710677
    %vm209 = vcmp.le.f32.partialorder %v202, 2.6794897e-08
    %vm210 = vcmp.le.f32.partialorder %v202, -0.70710677
    %vm211 = vcmp.le.f32.partialorder %v202, -1.0
    %v212 = vsel %vm208, 1, 0
    %v213 = vcvt.s32.f32 %v212
    %v214 = vsel %vm209, 1, 0
    %v215 = vcvt.s32.f32 %v214
    %v216 = vadd.f32 %v213, %v215
    %v217 = vsel %vm210, 1, 0
    %v218 = vcvt.s32.f32 %v217
    %v219 = vadd.f32 %v216, %v218
    %v220 = vsel %vm211, 1, 0
    %v221 = vcvt.s32.f32 %v220
    %v222 = vadd.f32 %v219, %v221
    %vm223 = vmxor %vm208, %vm209
    %vm224 = vmxor %vm210, %vm211
    %vm225 = vmxor %vm223, %vm224
    %v226 = vsel %vm225, 1, 0
    %v227 = vcvt.s32.f32 %v226
    %v228 = vmul.f32 %v227, 2.0
    %v229 = vsub.f32 1.0, %v228
    %v230 = vmul.f32 %v229, %v207
    %v231 = vmul.f32 %v222, 2.0
    %v232 = vsub.f32 %v230, %v231
    %v233 = vld [vmem:[#allocation3] sm:$0xff]
    %235 = vset.pattern.permute.xlu0 0
    %236 = vperm.xlu0 %235, %v233
    %v237 = vpop.permute.xlu0 %236
    %v239 = vmul.f32 %v202, %v237
    %v240 = vmul.f32 %v232, %v237
    %v241 = vlaneseq
    %v242 = vand.u32 %v241, 127
    %s243 = smul.u32 0, 128
    %v244 = vstv %s243
    %v245 = vadd.s32 %v242, %v244
    %v246 = vld [vmem:[#allocation4] sm:$0xff]
    %247 = vset.pattern.permute.xlu0 0
    %248 = vperm.xlu0 %247, %v246
    %v249 = vpop.permute.xlu0 %248
    %vm250 = vcmp.eq.s32.totalorder %v245, %v249
    %v251 = vsel %vm250, 1, 0
    %v252 = vcvt.s32.f32 %v251
    %s253 = sld [smem:[#allocation10]]
    %v254 = vsub.f32 %v240, %v239
    %v255 = vstv %s253
    %v256 = vmul.f32 %v255, %v254
    %v257 = vmul.f32 %v252, %v256
    %v258 = vadd.f32 %v239, %v257
    %259 = vst [vmem:[#allocation16] sm:$0xff] %v258
    %vm260 = vcmp.lt.s32.totalorder %v245, 16
    %v261 = vsel %vm260, %v258, -1e+30
    %v262 = vld [vmem:[#allocation5] sm:$0xff]
    %263 = vmax.xlane.f32.xlu0 %v261
    %v264 = vpop.xlane.xlu0 %263
    %v265 = vmax.f32 %v262, %v264
    %v266 = vsub.f32 %v262, %v265
    %v267 = vmul.f32 %v266, 1.442695
    %v268 = vpow.pop %v267
    %270 = vset.pattern.permute.xlu0 0
    %271 = vperm.xlu0 %270, %v265
    %v272 = vpop.permute.xlu0 %271
    %v274 = vsub.f32 %v261, %v272
    %v275 = vmul.f32 %v274, 1.442695
    %v276 = vpow.pop %v275
    %277 = vadd.xlane.f32.xlu0 %v276
    %v278 = vpop.xlane.xlu0 %277
    %v279 = vld [vmem:[#allocation6] sm:$0xff]
    %v280 = vmul.f32 %v268, %v279
    %v281 = vadd.f32 %v280, %v278
    %vm282 = vcmask 7168
    %283 = vst.msk [vmem:[#allocation6] sm:$0xff] %vm282, %v281
    %284 = vst.msk [vmem:[#allocation5] sm:$0xff] %vm282, %v265
    %v285 = vld [vmem:[#allocation7] sm:$0xff]
    %v286 = vmul.f32 %v258, %v252
    %287 = vadd.xlane.f32.xlu0 %v286
    %v288 = vpop.xlane.xlu0 %287
    %v289 = vadd.f32 %v285, %v288
    %290 = vst.msk [vmem:[#allocation7] sm:$0xff] %vm282, %v289
    // Predicated region
    $region26: #{tpu_custom_call.1} parent=1 // pred_check
      %p291 = pneg %p53
    $region27: #{tpu_custom_call.1} parent=1 // pred_check_branch
      %293 = sbr.rel (%p291) target = $region29
    $region28: #{tpu_custom_call.1} parent=1 // pred_region
      %v294 = vld [vmem:[#allocation5] sm:$0xff]
      %v295 = vld [vmem:[#allocation6] sm:$0xff]
      %v296 = vlog2.pop %v295
      %v297 = vmul.f32 %v296, 0.6931472
      %v298 = vadd.f32 %v294, %v297
      %v299 = vld [vmem:[#allocation7] sm:$0xff]
      %v300 = vsub.f32 %v298, %v299
      %302 = vset.pattern.permute.xlu0 0
      %303 = vperm.xlu0 %302, %v300
      %v304 = vpop.permute.xlu0 %303
      %306 = vst [vmem:[#allocation17] sm:$0xff] %v304
    $region29: #{tpu_custom_call.1} parent=1 // pred_fallthru
      _
    // Predicated region
    $region30: #{tpu_custom_call.1} parent=1 // pred_check
      _
    $region31: #{tpu_custom_call.1} parent=1 // pred_check_branch
      %308 = sbr.rel (0) target = $region33
    $region32: #{tpu_custom_call.1} parent=1 // pred_region
      %s310 = ssub.s32 128, 128
      %311 = vsyncadd [#allocation13], %s310
      %s313 = sshll.u32 [#allocation16], 4
      %s314 = int_to_ptr.vmem [resolvable:$true] %s313
      %316 = dma.vmem_to_hbm [thread:$0]  %s314, 128, %s4, [#allocation13]
    $region33: #{tpu_custom_call.1} parent=1 // pred_fallthru
      _
    // Predicated region
    $region34: #{tpu_custom_call.1} parent=1 // pred_check
      _
    $region35: #{tpu_custom_call.1} parent=1 // pred_check_branch
      %318 = sbr.rel (0) target = $region37
    $region36: #{tpu_custom_call.1} parent=1 // pred_region
      %s320 = ssub.s32 128, 128
      %321 = vsyncadd [#allocation18], %s320
      %s323 = sshll.u32 [#allocation17], 4
      %s324 = int_to_ptr.vmem [resolvable:$true] %s323
      %326 = dma.vmem_to_hbm [thread:$0]  %s324, 128, %s5, [#allocation18]
    $region37: #{tpu_custom_call.1} parent=1 // pred_fallthru
      _
    // Predicated region
    $region38: #{tpu_custom_call.1} parent=1 // pred_check
      _
    $region39: #{tpu_custom_call.1} parent=1 // pred_check_branch
      %328 = sbr.rel (0) target = $region41
    $region40: #{tpu_custom_call.1} parent=1 // pred_region
      %329 = dma.done [#allocation13], 128
    $region41: #{tpu_custom_call.1} parent=1 // pred_fallthru
      _
    // Predicated region
    $region42: #{tpu_custom_call.1} parent=1 // pred_check
      _
    $region43: #{tpu_custom_call.1} parent=1 // pred_check_branch
      %331 = sbr.rel (0) target = $region45
    $region44: #{tpu_custom_call.1} parent=1 // pred_region
      %332 = dma.done [#allocation18], 128
    $region45: #{tpu_custom_call.1} parent=1 // pred_fallthru
      _
    %333 = vsyncpa [#allocation12], 1
    %334 = vsyncpa [#allocation15], 1
    %335 = vsyncpa [#allocation13], 1
    %336 = vsyncpa [#allocation18], 1

</llo_original>
